<compile_context>
chip_gen: v7x
topology: tpu7x:2x2x1
jax: 0.10.0
libtpu: 0.0.40
codegen_flags: <defaults>
</compile_context>

<pallas_src>
import functools

import jax
import jax.numpy as jnp
from jax.experimental import pallas as pl
from jax.experimental.pallas import tpu as pltpu

_LANE = 128
_SUBLANE = 8
# Fused fast path: per-batch f32 working slab (C*S*4 bytes).  The cap keeps the
# double-buffered t1/t2/out blocks plus f32 temporaries well inside the raised
# scoped-VMEM limit on every generation (v7x has only 64 MiB physical).
_FUSED_SLAB_F32_BYTES = 3 << 20
# Streaming fallback: ~2 MiB per streamed input block (tuning knob: 2-4 MiB is
# better on v7x's 3.2 TB/s HBM; 1-2 MiB is right for v5e/v6e).
_STREAM_BLOCK_BYTES = 2 << 20
_MAX_TS = _STREAM_BLOCK_BYTES // (_SUBLANE * 4)          # 65536 lanes
_VMEM_LIMIT = 32 * 1024 * 1024


# ---------------------------------------------------------------------------
# Kernels
# ---------------------------------------------------------------------------
def _fused_kernel(t1_ref, t2_ref, wt_ref, bias_ref, mean_ref, scale_ref,
                  beta_ref, o_ref, *, inv_count):
    """One batch per grid step: pool + conv1x1/BN/ReLU/softmax + scale."""
    f32 = jnp.float32
    c = wt_ref.shape[0]

    # Global average of t1 + t2 over the spatial (lane) axis.
    s = t1_ref[0].astype(f32) + t2_ref[0].astype(f32)              # (C, S)
    pooled = jnp.sum(s, axis=-1, keepdims=True) * inv_count        # (C, 1)

    # conv1x1 as an exact-f32 VPU contraction: z[0, o] = sum_k pooled[k]*W[o,k]
    # (wt[k, o] = W[o, k]; k on sublanes, o on lanes).
    z = jnp.sum(pooled * wt_ref[...], axis=0, keepdims=True)       # (1, C)
    # BatchNorm (inference mode) + ReLU.
    z = (z + bias_ref[...] - mean_ref[...]) * scale_ref[...] + beta_ref[...]
    z = jnp.maximum(z, 0.0)
    # Channel softmax (every lane is a real channel: block spans the true C).
    m = jnp.max(z, axis=-1, keepdims=True)
    e = jnp.exp(z - m)
    attn = e / jnp.sum(e, axis=-1, keepdims=True)                  # (1, C)

    # Flip (1, C) -> (C, 1) without a transpose op: diagonal select + lane sum.
    r = jax.lax.broadcasted_iota(jnp.int32, (c, c), 0)
    k = jax.lax.broadcasted_iota(jnp.int32, (c, c), 1)
    attn_col = jnp.sum(jnp.where(r == k, attn, 0.0), axis=-1, keepdims=True)

    # out = (t1 + t2) * attn   (== t1*attn + t2*attn)
    o_ref[0] = ((t1_ref[0].astype(f32) + t2_ref[0].astype(f32)) * attn_col
                ).astype(o_ref.dtype)


def _pool_kernel(t1_ref, t2_ref, o_ref, *, inv_count, s_total, ts, mask_tail):
    """Streaming per-row mean of (t1 + t2); (R, 1) output block is resident
    across the spatial ("arbitrary") axis and used as the accumulator."""
    j = pl.program_id(1)

    @pl.when(j == 0)
    def _():
        o_ref[...] = jnp.zeros_like(o_ref)

    s = t1_ref[...].astype(jnp.float32) + t2_ref[...].astype(jnp.float32)
    if mask_tail:
        # Edge-block lanes past S contain undefined data -> mask them out.
        col = jax.lax.broadcasted_iota(jnp.int32, s.shape, 1) + j * ts
        s = jnp.where(col < s_total, s, 0.0)
    o_ref[...] += jnp.sum(s, axis=-1, keepdims=True)

    @pl.when(j == pl.num_programs(1) - 1)
    def _():
        o_ref[...] *= inv_count


def _scale_kernel(t1_ref, t2_ref, a_ref, o_ref):
    """out = (t1 + t2) * attn, attention broadcast from a resident (R, 1) block."""
    a = a_ref[...]                                                 # (R, 1) f32
    s = t1_ref[...].astype(jnp.float32) + t2_ref[...].astype(jnp.float32)
    o_ref[...] = (s * a).astype(o_ref.dtype)


# ---------------------------------------------------------------------------
# Wrapper
# ---------------------------------------------------------------------------
def _stream_tiles(rows, s, itemsize):
    """(rows, spatial) block sizes for the streaming fallback."""
    if s <= _LANE:
        ts = s                                   # full extent (allowed)
    else:
        ts = min(_MAX_TS, (s // _LANE) * _LANE)  # multiple of 128
    if rows <= _SUBLANE:
        rb = rows                                # full extent (allowed)
    else:
        by_budget = (_STREAM_BLOCK_BYTES // (ts * itemsize)) // _SUBLANE * _SUBLANE
        rb = max(_SUBLANE, min((rows // _SUBLANE) * _SUBLANE, by_budget))
    return rb, ts


def cross_attention_block(t1, t2, conv_w, conv_b, bn_gamma, bn_beta,
                          bn_mean, bn_var, *, eps=1e-5, force_streaming=False):
    """Pallas TPU forward of CrossAttentionBlock (BatchNorm in inference mode)."""
    B, C, H, W = t1.shape
    S = H * W
    itemsize = jnp.dtype(t1.dtype).itemsize
    f32 = jnp.float32

    # Attention-head parameters (tiny): conv weight transposed + BN folded to
    # a per-channel scale/shift (running stats, inference mode).
    w2 = conv_w.reshape(C, C).astype(f32)                   # (C_out, C_in)
    wt = jnp.transpose(w2)                                  # wt[k, o] = W[o, k]
    bias = conv_b.astype(f32).reshape(1, C)
    mean = bn_mean.astype(f32).reshape(1, C)
    scale = (bn_gamma.astype(f32) *
             jax.lax.rsqrt(bn_var.astype(f32) + eps)).reshape(1, C)
    beta = bn_beta.astype(f32).reshape(1, C)

    use_fused = (C * S * 4 <= _FUSED_SLAB_F32_BYTES) and not force_streaming

    if use_fused:
        # ---- fused single pass: 3X HBM traffic, one launch -------------------
        x1 = t1.reshape(B, C, S)          # contiguous -> free reshape
        x2 = t2.reshape(B, C, S)
        big = pl.BlockSpec((1, C, S), lambda b: (b, 0, 0))

        def small(shape):
            return pl.BlockSpec(shape, lambda b: (0, 0))

        out = pl.pallas_call(
            functools.partial(_fused_kernel, inv_count=1.0 / float(S)),
            out_shape=jax.ShapeDtypeStruct((B, C, S), t1.dtype),
            grid_spec=pltpu.PrefetchScalarGridSpec(
                num_scalar_prefetch=0,
                grid=(B,),
                in_specs=[big, big,
                          small((C, C)), small((1, C)), small((1, C)),
                          small((1, C)), small((1, C))],
                out_specs=big),
            compiler_params=pltpu.CompilerParams(
                dimension_semantics=("parallel",),
                vmem_limit_bytes=_VMEM_LIMIT),
            cost_estimate=pl.CostEstimate(
                flops=int(4 * B * C * S),
                transcendentals=int(B * C),
                bytes_accessed=int(3 * B * C * S * itemsize)),
        )(x1, x2, wt, bias, mean, scale, beta)
        return out.reshape(B, C, H, W)

    # ---- streaming fallback: sublane-dense (B*C, S) layout, no pad/slice ----
    rows = B * C
    x1 = t1.reshape(rows, S)
    x2 = t2.reshape(rows, S)
    rb, ts = _stream_tiles(rows, S, itemsize)
    n_r = pl.cdiv(rows, rb)
    n_s = pl.cdiv(S, ts)
    blk = pl.BlockSpec((rb, ts), lambda i, j: (i, j))
    col = pl.BlockSpec((rb, 1), lambda i, j: (i, 0))

    pooled = pl.pallas_call(
        functools.partial(_pool_kernel, inv_count=1.0 / float(S),
                          s_total=S, ts=ts, mask_tail=(S % ts != 0)),
        out_shape=jax.ShapeDtypeStruct((rows, 1), jnp.float32),
        grid_spec=pltpu.PrefetchScalarGridSpec(
            num_scalar_prefetch=0, grid=(n_r, n_s),
            in_specs=[blk, blk], out_specs=col),
        compiler_params=pltpu.CompilerParams(
            dimension_semantics=("parallel", "arbitrary"),
            vmem_limit_bytes=_VMEM_LIMIT),
        cost_estimate=pl.CostEstimate(
            flops=int(2 * rows * S), transcendentals=0,
            bytes_accessed=int(2 * rows * S * itemsize + rows * 4)),
    )(x1, x2)

    # Tiny attention head in plain jnp (microseconds of work; no launch needed).
    p = pooled.reshape(B, C)
    z = jnp.sum(p[:, :, None] * wt[None, :, :], axis=1)      # exact-f32 conv1x1
    z = (z + bias - mean) * scale + beta                      # BN (inference)
    z = jnp.maximum(z, 0.0)                                   # ReLU
    attn = jax.nn.softmax(z, axis=-1)
    attn_rows = attn.reshape(rows, 1).astype(f32)

    out = pl.pallas_call(
        _scale_kernel,
        out_shape=jax.ShapeDtypeStruct((rows, S), t1.dtype),
        grid_spec=pltpu.PrefetchScalarGridSpec(
            num_scalar_prefetch=0, grid=(n_r, n_s),
            in_specs=[blk, blk, col], out_specs=blk),
        compiler_params=pltpu.CompilerParams(
            dimension_semantics=("parallel", "parallel"),
            vmem_limit_bytes=_VMEM_LIMIT),
        cost_estimate=pl.CostEstimate(
            flops=int(2 * rows * S), transcendentals=0,
            bytes_accessed=int(3 * rows * S * itemsize + rows * 4)),
    )(x1, x2, attn_rows)

    return out.reshape(B, C, H, W)


# ---------------------------------------------------------------------------
# Pure-JAX reference (mirrors the PyTorch forward, BN in inference mode)
# ---------------------------------------------------------------------------
def _cross_attention_ref(t1, t2, conv_w, conv_b, gamma, beta, mean, var,
                         eps=1e-5):
    B, C, H, W = t1.shape
    s = t1.astype(jnp.float32) + t2.astype(jnp.float32)
    pooled = jnp.mean(s, axis=(2, 3))                               # (B, C)
    w2 = conv_w.reshape(C, C).astype(jnp.float32)
    z = jnp.sum(pooled[:, None, :] * w2[None, :, :], axis=-1) + conv_b
    z = (z - mean) / jnp.sqrt(var + eps) * gamma + beta
    z = jnp.maximum(z, 0.0)
    attn = jax.nn.softmax(z, axis=1)
    a = attn[:, :, None, None]
    return t1 * a + t2 * a


if __name__ == "__main__":
    key = jax.random.PRNGKey(0)
    k1, k2, k3, k4, k5, k6, k7, k8 = jax.random.split(key, 8)

    B, C, H, W = 2, 4, 16, 16
    t1 = jax.random.normal(k1, (B, C, H, W), dtype=jnp.float32)
    t2 = jax.random.normal(k2, (B, C, H, W), dtype=jnp.float32)

    conv_w = 0.5 * jax.random.normal(k3, (C, C, 1, 1), dtype=jnp.float32)
    conv_b = 0.1 * jax.random.normal(k4, (C,), dtype=jnp.float32)
    bn_gamma = 1.0 + 0.1 * jax.random.normal(k5, (C,), dtype=jnp.float32)
    bn_beta = 0.1 * jax.random.normal(k6, (C,), dtype=jnp.float32)
    bn_mean = 0.1 * jax.random.normal(k7, (C,), dtype=jnp.float32)
    bn_var = jax.random.uniform(k8, (C,), dtype=jnp.float32,
                                minval=0.5, maxval=1.5)

    ref = jax.block_until_ready(
        _cross_attention_ref(t1, t2, conv_w, conv_b, bn_gamma, bn_beta,
                             bn_mean, bn_var))

    # Fused single-pass fast path (the common case).
    out = jax.block_until_ready(
        cross_attention_block(t1, t2, conv_w, conv_b, bn_gamma, bn_beta,
                              bn_mean, bn_var))
    assert out.shape == ref.shape, (out.shape, ref.shape)
    assert jnp.allclose(out, ref, atol=1e-4, rtol=1e-4), (
        float(jnp.max(jnp.abs(out - ref))))

    # Streaming fallback path (forced at small shapes for validation).
    out_s = jax.block_until_ready(
        cross_attention_block(t1, t2, conv_w, conv_b, bn_gamma, bn_beta,
                              bn_mean, bn_var, force_streaming=True))
    assert out_s.shape == ref.shape, (out_s.shape, ref.shape)
    assert jnp.allclose(out_s, ref, atol=1e-4, rtol=1e-4), (
        float(jnp.max(jnp.abs(out_s - ref))))

    print("KERNEL_OK")
</pallas_src>

<mosaic_0001>
module attributes {stable_mosaic.version = 11 : i64} {
  func.func @_fused_kernel(%arg0: i32, %arg1: memref<1x4x256xf32, #tpu.memory_space<vmem>>, %arg2: memref<1x4x256xf32, #tpu.memory_space<vmem>>, %arg3: memref<4x4xf32, #tpu.memory_space<vmem>>, %arg4: memref<1x4xf32, #tpu.memory_space<vmem>>, %arg5: memref<1x4xf32, #tpu.memory_space<vmem>>, %arg6: memref<1x4xf32, #tpu.memory_space<vmem>>, %arg7: memref<1x4xf32, #tpu.memory_space<vmem>>, %arg8: memref<1x4x256xf32, #tpu.memory_space<vmem>>) attributes {dimension_semantics = [#tpu.dimension_semantics<parallel>], iteration_bounds = array<i64: 2>, scalar_prefetch = 0 : i64, scratch_operands = 0 : i64, tpu.core_type = #tpu.core_type<tc>, window_params = [{transform_indices = @transform_0, window_bounds = array<i64: 1, 4, 256>}, {transform_indices = @transform_1, window_bounds = array<i64: 1, 4, 256>}, {pipeline_mode = #tpu.pipeline_mode<synchronous>, transform_indices = @transform_2, window_bounds = array<i64: 4, 4>}, {pipeline_mode = #tpu.pipeline_mode<synchronous>, transform_indices = @transform_3, window_bounds = array<i64: 1, 4>}, {pipeline_mode = #tpu.pipeline_mode<synchronous>, transform_indices = @transform_4, window_bounds = array<i64: 1, 4>}, {pipeline_mode = #tpu.pipeline_mode<synchronous>, transform_indices = @transform_5, window_bounds = array<i64: 1, 4>}, {pipeline_mode = #tpu.pipeline_mode<synchronous>, transform_indices = @transform_6, window_bounds = array<i64: 1, 4>}, {transform_indices = @transform_7, window_bounds = array<i64: 1, 4, 256>}]} {
    %c0 = arith.constant 0 : index
    %c0_0 = arith.constant 0 : index
    %c0_1 = arith.constant 0 : index
    %0 = vector.load %arg1[%c0, %c0_0, %c0_1] : memref<1x4x256xf32, #tpu.memory_space<vmem>>, vector<1x4x256xf32>
    %1 = vector.shape_cast %0 : vector<1x4x256xf32> to vector<4x256xf32>
    %c0_2 = arith.constant 0 : index
    %c0_3 = arith.constant 0 : index
    %c0_4 = arith.constant 0 : index
    %2 = vector.load %arg2[%c0_2, %c0_3, %c0_4] : memref<1x4x256xf32, #tpu.memory_space<vmem>>, vector<1x4x256xf32>
    %3 = vector.shape_cast %2 : vector<1x4x256xf32> to vector<4x256xf32>
    %4 = arith.addf %1, %3 : vector<4x256xf32>
    %cst = arith.constant dense<0.000000e+00> : vector<4xf32>
    %5 = vector.multi_reduction <add>, %4, %cst [1] : vector<4x256xf32> to vector<4xf32>
    %6 = vector.shape_cast %5 : vector<4xf32> to vector<4x1xf32>
    %cst_5 = arith.constant 3.906250e-03 : f32
    %7 = vector.broadcast %cst_5 : f32 to vector<4x1xf32>
    %8 = arith.mulf %6, %7 : vector<4x1xf32>
    %c0_6 = arith.constant 0 : index
    %c0_7 = arith.constant 0 : index
    %9 = vector.load %arg3[%c0_6, %c0_7] : memref<4x4xf32, #tpu.memory_space<vmem>>, vector<4x4xf32>
    %10 = vector.broadcast %8 : vector<4x1xf32> to vector<4x4xf32>
    %11 = arith.mulf %10, %9 : vector<4x4xf32>
    %cst_8 = arith.constant dense<0.000000e+00> : vector<4xf32>
    %12 = vector.multi_reduction <add>, %11, %cst_8 [0] : vector<4x4xf32> to vector<4xf32>
    %13 = vector.shape_cast %12 : vector<4xf32> to vector<1x4xf32>
    %c0_9 = arith.constant 0 : index
    %c0_10 = arith.constant 0 : index
    %14 = vector.load %arg4[%c0_9, %c0_10] : memref<1x4xf32, #tpu.memory_space<vmem>>, vector<1x4xf32>
    %15 = arith.addf %13, %14 : vector<1x4xf32>
    %c0_11 = arith.constant 0 : index
    %c0_12 = arith.constant 0 : index
    %16 = vector.load %arg5[%c0_11, %c0_12] : memref<1x4xf32, #tpu.memory_space<vmem>>, vector<1x4xf32>
    %17 = arith.subf %15, %16 : vector<1x4xf32>
    %c0_13 = arith.constant 0 : index
    %c0_14 = arith.constant 0 : index
    %18 = vector.load %arg6[%c0_13, %c0_14] : memref<1x4xf32, #tpu.memory_space<vmem>>, vector<1x4xf32>
    %19 = arith.mulf %17, %18 : vector<1x4xf32>
    %c0_15 = arith.constant 0 : index
    %c0_16 = arith.constant 0 : index
    %20 = vector.load %arg7[%c0_15, %c0_16] : memref<1x4xf32, #tpu.memory_space<vmem>>, vector<1x4xf32>
    %21 = arith.addf %19, %20 : vector<1x4xf32>
    %cst_17 = arith.constant 0.000000e+00 : f32
    %22 = vector.broadcast %cst_17 : f32 to vector<1x4xf32>
    %23 = arith.maximumf %21, %22 : vector<1x4xf32>
    %cst_18 = arith.constant dense<0xFF800000> : vector<1xf32>
    %24 = vector.multi_reduction <maximumf>, %23, %cst_18 [1] : vector<1x4xf32> to vector<1xf32>
    %25 = vector.shape_cast %24 : vector<1xf32> to vector<1x1xf32>
    %26 = vector.broadcast %25 : vector<1x1xf32> to vector<1x4xf32>
    %27 = arith.subf %23, %26 : vector<1x4xf32>
    %28 = math.exp %27 : vector<1x4xf32>
    %cst_19 = arith.constant dense<0.000000e+00> : vector<1xf32>
    %29 = vector.multi_reduction <add>, %28, %cst_19 [1] : vector<1x4xf32> to vector<1xf32>
    %30 = vector.shape_cast %29 : vector<1xf32> to vector<1x1xf32>
    %31 = vector.broadcast %30 : vector<1x1xf32> to vector<1x4xf32>
    %32 = arith.divf %28, %31 : vector<1x4xf32>
    %33 = tpu.iota {dimensions = array<i32: 0>} : vector<4x4xi32>
    %34 = tpu.iota {dimensions = array<i32: 1>} : vector<4x4xi32>
    %35 = arith.cmpi eq, %33, %34 : vector<4x4xi32>
    %cst_20 = arith.constant 0.000000e+00 : f32
    %36 = vector.shape_cast %32 : vector<1x4xf32> to vector<1x4xf32>
    %37 = vector.broadcast %36 : vector<1x4xf32> to vector<4x4xf32>
    %38 = vector.broadcast %cst_20 : f32 to vector<4x4xf32>
    %39 = arith.select %35, %37, %38 : vector<4x4xi1>, vector<4x4xf32>
    %cst_21 = arith.constant dense<0.000000e+00> : vector<4xf32>
    %40 = vector.multi_reduction <add>, %39, %cst_21 [1] : vector<4x4xf32> to vector<4xf32>
    %41 = vector.shape_cast %40 : vector<4xf32> to vector<4x1xf32>
    %c0_22 = arith.constant 0 : index
    %c0_23 = arith.constant 0 : index
    %c0_24 = arith.constant 0 : index
    %42 = vector.load %arg1[%c0_22, %c0_23, %c0_24] : memref<1x4x256xf32, #tpu.memory_space<vmem>>, vector<1x4x256xf32>
    %43 = vector.shape_cast %42 : vector<1x4x256xf32> to vector<4x256xf32>
    %c0_25 = arith.constant 0 : index
    %c0_26 = arith.constant 0 : index
    %c0_27 = arith.constant 0 : index
    %44 = vector.load %arg2[%c0_25, %c0_26, %c0_27] : memref<1x4x256xf32, #tpu.memory_space<vmem>>, vector<1x4x256xf32>
    %45 = vector.shape_cast %44 : vector<1x4x256xf32> to vector<4x256xf32>
    %46 = arith.addf %43, %45 : vector<4x256xf32>
    %47 = vector.broadcast %41 : vector<4x1xf32> to vector<4x256xf32>
    %48 = arith.mulf %46, %47 : vector<4x256xf32>
    %c0_28 = arith.constant 0 : index
    %c0_29 = arith.constant 0 : index
    %c0_30 = arith.constant 0 : index
    %49 = vector.load %arg8[%c0_28, %c0_29, %c0_30] : memref<1x4x256xf32, #tpu.memory_space<vmem>>, vector<1x4x256xf32>
    %50 = vector.shape_cast %49 : vector<1x4x256xf32> to vector<4x256xf32>
    %51 = vector.shape_cast %48 : vector<4x256xf32> to vector<1x4x256xf32>
    tpu.vector_store %arg8[%c0_28, %c0_29, %c0_30], %51 {strides = array<i32>} : memref<1x4x256xf32, #tpu.memory_space<vmem>>, vector<1x4x256xf32>,
    return
  }
  func.func @transform_0(%arg0: i32) -> (i32, i32, i32) {
    %c0_i32 = arith.constant 0 : i32
    %c0_i32_0 = arith.constant 0 : i32
    %c0_i32_1 = arith.constant 0 : i32
    return %arg0, %c0_i32, %c0_i32_0 : i32, i32, i32
  }
  func.func @transform_1(%arg0: i32) -> (i32, i32, i32) {
    %c0_i32 = arith.constant 0 : i32
    %c0_i32_0 = arith.constant 0 : i32
    %c0_i32_1 = arith.constant 0 : i32
    return %arg0, %c0_i32, %c0_i32_0 : i32, i32, i32
  }
  func.func @transform_2(%arg0: i32) -> (i32, i32) {
    %c0_i32 = arith.constant 0 : i32
    %c0_i32_0 = arith.constant 0 : i32
    %c0_i32_1 = arith.constant 0 : i32
    return %c0_i32, %c0_i32_0 : i32, i32
  }
  func.func @transform_3(%arg0: i32) -> (i32, i32) {
    %c0_i32 = arith.constant 0 : i32
    %c0_i32_0 = arith.constant 0 : i32
    %c0_i32_1 = arith.constant 0 : i32
    return %c0_i32, %c0_i32_0 : i32, i32
  }
  func.func @transform_4(%arg0: i32) -> (i32, i32) {
    %c0_i32 = arith.constant 0 : i32
    %c0_i32_0 = arith.constant 0 : i32
    %c0_i32_1 = arith.constant 0 : i32
    return %c0_i32, %c0_i32_0 : i32, i32
  }
  func.func @transform_5(%arg0: i32) -> (i32, i32) {
    %c0_i32 = arith.constant 0 : i32
    %c0_i32_0 = arith.constant 0 : i32
    %c0_i32_1 = arith.constant 0 : i32
    return %c0_i32, %c0_i32_0 : i32, i32
  }
  func.func @transform_6(%arg0: i32) -> (i32, i32) {
    %c0_i32 = arith.constant 0 : i32
    %c0_i32_0 = arith.constant 0 : i32
    %c0_i32_1 = arith.constant 0 : i32
    return %c0_i32, %c0_i32_0 : i32, i32
  }
  func.func @transform_7(%arg0: i32) -> (i32, i32, i32) {
    %c0_i32 = arith.constant 0 : i32
    %c0_i32_0 = arith.constant 0 : i32
    %c0_i32_1 = arith.constant 0 : i32
    return %arg0, %c0_i32, %c0_i32_0 : i32, i32, i32
  }
}

</mosaic_0001>

<llo_original>
// kernel: tpu_custom_call.1
$region0: #{tpu_custom_call.1}
  #allocation0 [shape = 'u32[]', space=smem, size = 0x4, offset = 0x4, fixed_abs, tag = 'smem constant byte address 0x4 - core index']
  #allocation1 [shape = 'u32[144,128]{1,0:T(1,128)}', space=vmem, size = 0x12000, scoped, tag = 'internal scratch']
  %s0 = inlined_call_operand.hbm [shape: f32[2,4,256], index: 0, kind: input, shape index: {}]
  %s1 = inlined_call_operand.hbm [shape: f32[2,4,256], index: 1, kind: input, shape index: {}]
  %s2 = inlined_call_operand.vmem [shape: f32[4,4], index: 2, kind: input, shape index: {}]
  %s3 = inlined_call_operand.vmem [shape: f32[1,4], index: 3, kind: input, shape index: {}]
  %s4 = inlined_call_operand.vmem [shape: f32[1,4], index: 4, kind: input, shape index: {}]
  %s5 = inlined_call_operand.vmem [shape: f32[1,4], index: 5, kind: input, shape index: {}]
  %s6 = inlined_call_operand.vmem [shape: f32[1,4], index: 6, kind: input, shape index: {}]
  %s7 = inlined_call_operand.hbm [shape: f32[2,4,256], index: 7, kind: output, shape index: {}]
  %s8 = sld [smem:[#allocation0]]
  $region69: #{tpu_custom_call.1} parent=0
    _
  %s10 = ssub.s32 1, %s8
  %s11 = scalar_select 0, %s10, %s8
  $region1: #{tpu_custom_call.1} parent=0
    #allocation2 [shape = 'u8[8192]{0}', space=vmem, size = 0x2000, scoped, tag = 'input window, operand 0']
    #allocation3 [shape = 's32[2]{0}', space=sflag, size = 0x8, scoped, tag = 'scoped memory for tpu_custom_call.1']
    #allocation4 [shape = 's32[2]{0}', space=sflag, size = 0x8, scoped, tag = 'scoped memory for tpu_custom_call.1']
    #allocation5 [shape = 'u8[8192]{0}', space=vmem, size = 0x2000, scoped, tag = 'input window, operand 1']
    #allocation6 [shape = 's32[2]{0}', space=sflag, size = 0x8, scoped, tag = 'scoped memory for tpu_custom_call.1']
    #allocation7 [shape = 'u8[8192]{0}', space=vmem, size = 0x2000, scoped, tag = 'output window, operand 0']
    %12 = vsyncpa [#allocation3], 0
    %s13 = scalar_lea.sflag [#allocation3], 1
    %14 = vsyncpa %s13, 0
    %15 = vsyncpa [#allocation6], 0
    %s16 = scalar_lea.sflag [#allocation6], 1
    %17 = vsyncpa %s16, 0
    %18 = vsyncpa [#allocation4], 0
    %s19 = scalar_lea.sflag [#allocation4], 1
    %20 = vsyncpa %s19, 0
    loop: start=0, step=1, limit=4
    $region2: #{tpu_custom_call.1} parent=1 // loop_pre_header
      _
    $region3: #{tpu_custom_call.1} parent=1 // loop_header
      %s22 = sphi 0, %s26
      %p23 = scmp.ge.s32.totalorder %s22, 4
      %s32 = sphi 0, %s34
      %s35 = sphi 0, %s32
      %s36 = sphi 0, %s35
      %s52 = sphi 0, %s36
      %s58 = sphi 0, %s60
      %s61 = sphi 0, %s58
      %s62 = sphi 0, %s61
      %s78 = sphi 0, %s62
      %s82 = sphi 0, %s82
      %s84 = sphi 0, %s82
      %s85 = sphi 0, %s84
      %s99 = sphi 0, %s85
      %s103 = sphi 0, %s103
      %s105 = sphi 0, %s103
      %s106 = sphi 0, %s105
      %s120 = sphi 0, %s106
      %s124 = sphi 0, %s124
      %s126 = sphi 0, %s124
      %s127 = sphi 0, %s126
      %s141 = sphi 0, %s127
      %s145 = sphi 0, %s145
      %s147 = sphi 0, %s145
      %s148 = sphi 0, %s147
      %s162 = sphi 0, %s148
      %s166 = sphi 0, %s166
      %s168 = sphi 0, %s166
      %s169 = sphi 0, %s168
      %s183 = sphi 0, %s169
      %s189 = sphi 0, %s191
      %s192 = sphi 0, %s189
      %s193 = sphi 0, %s192
      %s209 = sphi 0, %s193
    $region4: #{tpu_custom_call.1} parent=1 // loop_header_branch
      %25 = sbr.rel (%p23) target = $region8
    $region5: #{tpu_custom_call.1} parent=1 // loop_body
      %s27 = ssub.s32 %s22, 1
      %s28 = ssub.s32 %s22, 2
      %s29 = sadd.s32 %s22, 1
      %s30 = ssub.s32 %s22, %s29
      %p31 = scmp.eq.s32.totalorder %s30, 0
      %s33 = sadd.s32 %s32, 1
      %s34 = scalar_select %p31, %s32, %s33
      %p37 = pneg %p31
      %p38 = scmp.eq.s32.totalorder %s22, 1
      %p39 = por %p37, %p38
      %p40 = scmp.ne.s32.totalorder %s32, %s35
      %p41 = scmp.eq.s32.totalorder %s22, 0
      %p42 = por %p40, %p41
      %p43 = scmp.ne.s32.totalorder %s32, %s35
      %p44 = scmp.eq.s32.totalorder %s27, 1
      %p45 = por %p43, %p44
      %p46 = scmp.ne.s32.totalorder %s35, %s36
      %p47 = scmp.eq.s32.totalorder %s27, 0
      %p48 = por %p46, %p47
      %p49 = scmp.ne.s32.totalorder %s35, %s36
      %p50 = scmp.eq.s32.totalorder %s28, 1
      %p51 = por %p49, %p50
      %p53 = scmp.ne.s32.totalorder %s36, %s52
      %p54 = scmp.eq.s32.totalorder %s28, 0
      %p55 = por %p53, %p54
      %s56 = ssub.s32 %s22, %s29
      %p57 = scmp.eq.s32.totalorder %s56, 0
      %s59 = sadd.s32 %s58, 1
      %s60 = scalar_select %p57, %s58, %s59
      %p63 = pneg %p57
      %p64 = scmp.eq.s32.totalorder %s22, 1
      %p65 = por %p63, %p64
      %p66 = scmp.ne.s32.totalorder %s58, %s61
      %p67 = scmp.eq.s32.totalorder %s22, 0
      %p68 = por %p66, %p67
      %p69 = scmp.ne.s32.totalorder %s58, %s61
      %p70 = scmp.eq.s32.totalorder %s27, 1
      %p71 = por %p69, %p70
      %p72 = scmp.ne.s32.totalorder %s61, %s62
      %p73 = scmp.eq.s32.totalorder %s27, 0
      %p74 = por %p72, %p73
      %p75 = scmp.ne.s32.totalorder %s61, %s62
      %p76 = scmp.eq.s32.totalorder %s28, 1
      %p77 = por %p75, %p76
      %p79 = scmp.ne.s32.totalorder %s62, %s78
      %p80 = scmp.eq.s32.totalorder %s28, 0
      %p81 = por %p79, %p80
      %s83 = sadd.s32 %s82, 1
      %p86 = scmp.eq.s32.totalorder %s22, 1
      %p87 = scmp.ne.s32.totalorder %s82, %s84
      %p88 = scmp.eq.s32.totalorder %s22, 0
      %p89 = por %p87, %p88
      %p90 = scmp.ne.s32.totalorder %s82, %s84
      %p91 = scmp.eq.s32.totalorder %s27, 1
      %p92 = por %p90, %p91
      %p93 = scmp.ne.s32.totalorder %s84, %s85
      %p94 = scmp.eq.s32.totalorder %s27, 0
      %p95 = por %p93, %p94
      %p96 = scmp.ne.s32.totalorder %s84, %s85
      %p97 = scmp.eq.s32.totalorder %s28, 1
      %p98 = por %p96, %p97
      %p100 = scmp.ne.s32.totalorder %s85, %s99
      %p101 = scmp.eq.s32.totalorder %s28, 0
      %p102 = por %p100, %p101
      %s104 = sadd.s32 %s103, 1
      %p107 = scmp.eq.s32.totalorder %s22, 1
      %p108 = scmp.ne.s32.totalorder %s103, %s105
      %p109 = scmp.eq.s32.totalorder %s22, 0
      %p110 = por %p108, %p109
      %p111 = scmp.ne.s32.totalorder %s103, %s105
      %p112 = scmp.eq.s32.totalorder %s27, 1
      %p113 = por %p111, %p112
      %p114 = scmp.ne.s32.totalorder %s105, %s106
      %p115 = scmp.eq.s32.totalorder %s27, 0
      %p116 = por %p114, %p115
      %p117 = scmp.ne.s32.totalorder %s105, %s106
      %p118 = scmp.eq.s32.totalorder %s28, 1
      %p119 = por %p117, %p118
      %p121 = scmp.ne.s32.totalorder %s106, %s120
      %p122 = scmp.eq.s32.totalorder %s28, 0
      %p123 = por %p121, %p122
      %s125 = sadd.s32 %s124, 1
      %p128 = scmp.eq.s32.totalorder %s22, 1
      %p129 = scmp.ne.s32.totalorder %s124, %s126
      %p130 = scmp.eq.s32.totalorder %s22, 0
      %p131 = por %p129, %p130
      %p132 = scmp.ne.s32.totalorder %s124, %s126
      %p133 = scmp.eq.s32.totalorder %s27, 1
      %p134 = por %p132, %p133
      %p135 = scmp.ne.s32.totalorder %s126, %s127
      %p136 = scmp.eq.s32.totalorder %s27, 0
      %p137 = por %p135, %p136
      %p138 = scmp.ne.s32.totalorder %s126, %s127
      %p139 = scmp.eq.s32.totalorder %s28, 1
      %p140 = por %p138, %p139
      %p142 = scmp.ne.s32.totalorder %s127, %s141
      %p143 = scmp.eq.s32.totalorder %s28, 0
      %p144 = por %p142, %p143
      %s146 = sadd.s32 %s145, 1
      %p149 = scmp.eq.s32.totalorder %s22, 1
      %p150 = scmp.ne.s32.totalorder %s145, %s147
      %p151 = scmp.eq.s32.totalorder %s22, 0
      %p152 = por %p150, %p151
      %p153 = scmp.ne.s32.totalorder %s145, %s147
      %p154 = scmp.eq.s32.totalorder %s27, 1
      %p155 = por %p153, %p154
      %p156 = scmp.ne.s32.totalorder %s147, %s148
      %p157 = scmp.eq.s32.totalorder %s27, 0
      %p158 = por %p156, %p157
      %p159 = scmp.ne.s32.totalorder %s147, %s148
      %p160 = scmp.eq.s32.totalorder %s28, 1
      %p161 = por %p159, %p160
      %p163 = scmp.ne.s32.totalorder %s148, %s162
      %p164 = scmp.eq.s32.totalorder %s28, 0
      %p165 = por %p163, %p164
      %s167 = sadd.s32 %s166, 1
      %p170 = scmp.eq.s32.totalorder %s22, 1
      %p171 = scmp.ne.s32.totalorder %s166, %s168
      %p172 = scmp.eq.s32.totalorder %s22, 0
      %p173 = por %p171, %p172
      %p174 = scmp.ne.s32.totalorder %s166, %s168
      %p175 = scmp.eq.s32.totalorder %s27, 1
      %p176 = por %p174, %p175
      %p177 = scmp.ne.s32.totalorder %s168, %s169
      %p178 = scmp.eq.s32.totalorder %s27, 0
      %p179 = por %p177, %p178
      %p180 = scmp.ne.s32.totalorder %s168, %s169
      %p181 = scmp.eq.s32.totalorder %s28, 1
      %p182 = por %p180, %p181
      %p184 = scmp.ne.s32.totalorder %s169, %s183
      %p185 = scmp.eq.s32.totalorder %s28, 0
      %p186 = por %p184, %p185
      %s187 = ssub.s32 %s22, %s29
      %p188 = scmp.eq.s32.totalorder %s187, 0
      %s190 = sadd.s32 %s189, 1
      %s191 = scalar_select %p188, %s189, %s190
      %p194 = pneg %p188
      %p195 = scmp.eq.s32.totalorder %s22, 1
      %p196 = por %p194, %p195
      %p197 = scmp.ne.s32.totalorder %s189, %s192
      %p198 = scmp.eq.s32.totalorder %s22, 0
      %p199 = por %p197, %p198
      %p200 = scmp.ne.s32.totalorder %s189, %s192
      %p201 = scmp.eq.s32.totalorder %s27, 1
      %p202 = por %p200, %p201
      %p203 = scmp.ne.s32.totalorder %s192, %s193
      %p204 = scmp.eq.s32.totalorder %s27, 0
      %p205 = por %p203, %p204
      %p206 = scmp.ne.s32.totalorder %s192, %s193
      %p207 = scmp.eq.s32.totalorder %s28, 1
      %p208 = por %p206, %p207
      %p210 = scmp.ne.s32.totalorder %s193, %s209
      %p211 = scmp.eq.s32.totalorder %s28, 0
      %p212 = por %p210, %p211
      %p213 = scmp.le.s32.totalorder 1, %s22
      %p214 = scmp.lt.s32.totalorder %s22, 3
      %p215 = pnand %p213, %p214
      %p216 = pneg %p215
      // Predicated region
      $region9: #{tpu_custom_call.1} parent=5 // pred_check
        _
      $region10: #{tpu_custom_call.1} parent=5 // pred_check_branch
        %218 = sbr.rel (%p215) target = $region12
      $region11: #{tpu_custom_call.1} parent=5 // pred_region
        %s219 = ssub.s32 %s22, 1
        // Predicated region
        $region13: #{tpu_custom_call.1} parent=11 // pred_check
          %p220 = pneg %p95
        $region14: #{tpu_custom_call.1} parent=11 // pred_check_branch
          %222 = sbr.rel (%p220) target = $region16
        $region15: #{tpu_custom_call.1} parent=11 // pred_region
          _
        $region16: #{tpu_custom_call.1} parent=11 // pred_fallthru
          _
        // Predicated region
        $region17: #{tpu_custom_call.1} parent=11 // pred_check
          %p223 = pneg %p116
        $region18: #{tpu_custom_call.1} parent=11 // pred_check_branch
          %225 = sbr.rel (%p223) target = $region20
        $region19: #{tpu_custom_call.1} parent=11 // pred_region
          _
        $region20: #{tpu_custom_call.1} parent=11 // pred_fallthru
          _
        // Predicated region
        $region21: #{tpu_custom_call.1} parent=11 // pred_check
          %p226 = pneg %p137
        $region22: #{tpu_custom_call.1} parent=11 // pred_check_branch
          %228 = sbr.rel (%p226) target = $region24
        $region23: #{tpu_custom_call.1} parent=11 // pred_region
          _
        $region24: #{tpu_custom_call.1} parent=11 // pred_fallthru
          _
        // Predicated region
        $region25: #{tpu_custom_call.1} parent=11 // pred_check
          %p229 = pneg %p158
        $region26: #{tpu_custom_call.1} parent=11 // pred_check_branch
          %231 = sbr.rel (%p229) target = $region28
        $region27: #{tpu_custom_call.1} parent=11 // pred_region
          _
        $region28: #{tpu_custom_call.1} parent=11 // pred_fallthru
          _
        // Predicated region
        $region29: #{tpu_custom_call.1} parent=11 // pred_check
          %p232 = pneg %p179
        $region30: #{tpu_custom_call.1} parent=11 // pred_check_branch
          %234 = sbr.rel (%p232) target = $region32
        $region31: #{tpu_custom_call.1} parent=11 // pred_region
          _
        $region32: #{tpu_custom_call.1} parent=11 // pred_fallthru
          _
      $region12: #{tpu_custom_call.1} parent=5 // pred_fallthru
        _
      %p235 = scmp.lt.s32.totalorder %s22, 2
      // Predicated region
      $region33: #{tpu_custom_call.1} parent=5 // pred_check
        %p236 = pneg %p235
      $region34: #{tpu_custom_call.1} parent=5 // pred_check_branch
        %238 = sbr.rel (%p236) target = $region36
      $region35: #{tpu_custom_call.1} parent=5 // pred_region
        // Predicated region
        $region37: #{tpu_custom_call.1} parent=35 // pred_check
          %p239 = pneg %p42
        $region38: #{tpu_custom_call.1} parent=35 // pred_check_branch
          %241 = sbr.rel (%p239) target = $region40
        $region39: #{tpu_custom_call.1} parent=35 // pred_region
          %s242 = sand.u32 %s32, 1
          %s243 = scalar_lea.sflag [#allocation3], %s242
          %s244 = sand.u32 %s32, 1
          %s245 = smul.addr %s244, 8
          %s246 = scalar_lea.vmem [#allocation2], %s245
          %s248 = ssub.s32 128, 128
          %249 = vsyncadd %s243, %s248
          %s250 = smul.addr %s22, 2
          %s251 = smul.addr %s250, 64
          %s252 = scalar_lea.hbm %s0, %s251
          %s254 = sshll.u32 %s246, 4
          %s255 = int_to_ptr.vmem [resolvable:$true] %s254
          %257 = dma.hbm_to_vmem [thread:$0]  %s252, 128, %s255, %s243
        $region40: #{tpu_custom_call.1} parent=35 // pred_fallthru
          _
        // Predicated region
        $region41: #{tpu_custom_call.1} parent=35 // pred_check
          %p258 = pneg %p68
        $region42: #{tpu_custom_call.1} parent=35 // pred_check_branch
          %260 = sbr.rel (%p258) target = $region44
        $region43: #{tpu_custom_call.1} parent=35 // pred_region
          %s261 = sand.u32 %s58, 1
          %s262 = scalar_lea.sflag [#allocation6], %s261
          %s263 = sand.u32 %s58, 1
          %s264 = smul.addr %s263, 8
          %s265 = scalar_lea.vmem [#allocation5], %s264
          %s267 = ssub.s32 128, 128
          %268 = vsyncadd %s262, %s267
          %s269 = smul.addr %s22, 2
          %s270 = smul.addr %s269, 64
          %s271 = scalar_lea.hbm %s1, %s270
          %s273 = sshll.u32 %s265, 4
          %s274 = int_to_ptr.vmem [resolvable:$true] %s273
          %276 = dma.hbm_to_vmem [thread:$0]  %s271, 128, %s274, %s262
        $region44: #{tpu_custom_call.1} parent=35 // pred_fallthru
          _
      $region36: #{tpu_custom_call.1} parent=5 // pred_fallthru
        _
      %p277 = scmp.le.s32.totalorder 1, %s22
      %p278 = scmp.lt.s32.totalorder %s22, 3
      %p279 = pnand %p277, %p278
      %p280 = pneg %p279
      // Predicated region
      $region45: #{tpu_custom_call.1} parent=5 // pred_check
        _
      $region46: #{tpu_custom_call.1} parent=5 // pred_check_branch
        %282 = sbr.rel (%p279) target = $region48
      $region47: #{tpu_custom_call.1} parent=5 // pred_region
        %s283 = ssub.s32 %s22, 1
        %s284 = sand.u32 %s35, 1
        %s285 = scalar_lea.sflag [#allocation3], %s284
        %s286 = sand.u32 %s35, 1
        %s287 = smul.addr %s286, 8
        %s288 = scalar_lea.vmem [#allocation2], %s287
        // Predicated region
        $region49: #{tpu_custom_call.1} parent=47 // pred_check
          %p289 = pneg %p48
        $region50: #{tpu_custom_call.1} parent=47 // pred_check_branch
          %291 = sbr.rel (%p289) target = $region52
        $region51: #{tpu_custom_call.1} parent=47 // pred_region
          %292 = dma.done %s285, 128
        $region52: #{tpu_custom_call.1} parent=47 // pred_fallthru
          _
        %s293 = sand.u32 %s61, 1
        %s294 = scalar_lea.sflag [#allocation6], %s293
        %s295 = sand.u32 %s61, 1
        %s296 = smul.addr %s295, 8
        %s297 = scalar_lea.vmem [#allocation5], %s296
        // Predicated region
        $region53: #{tpu_custom_call.1} parent=47 // pred_check
          %p298 = pneg %p74
        $region54: #{tpu_custom_call.1} parent=47 // pred_check_branch
          %300 = sbr.rel (%p298) target = $region56
        $region55: #{tpu_custom_call.1} parent=47 // pred_region
          %301 = dma.done %s294, 128
        $region56: #{tpu_custom_call.1} parent=47 // pred_fallthru
          _
        %s302 = sand.u32 %s35, 1
        %s303 = scalar_lea.sflag [#allocation3], %s302
        %s304 = sand.u32 %s35, 1
        %s305 = smul.addr %s304, 8
        %s306 = scalar_lea.vmem [#allocation2], %s305
        %p307 = pneg %p48
        %p308 = pneg %p45
        %s309 = sand.u32 %s61, 1
        %s310 = scalar_lea.sflag [#allocation6], %s309
        %s311 = sand.u32 %s61, 1
        %s312 = smul.addr %s311, 8
        %s313 = scalar_lea.vmem [#allocation5], %s312
        %p314 = pneg %p74
        %p315 = pneg %p71
        %p316 = pneg %p95
        %p317 = pneg %p92
        %p318 = pneg %p116
        %p319 = pneg %p113
        %p320 = pneg %p137
        %p321 = pneg %p134
        %p322 = pneg %p158
        %p323 = pneg %p155
        %p324 = pneg %p179
        %p325 = pneg %p176
        %p326 = pneg %p205
        %p327 = pneg %p202
        %s328 = sand.u32 %s192, 1
        %s329 = scalar_lea.sflag [#allocation4], %s328
        %s330 = sand.u32 %s192, 1
        %s331 = smul.addr %s330, 8
        %s332 = scalar_lea.vmem [#allocation7], %s331
        %v333 = vld [vmem:[%s288] sm:$0xff]
        %v334 = vld [vmem:[%s297] sm:$0xff]
        %v335 = vadd.f32 %v333, %v334
        %v337 = vcombine.high %v335, %v335
        %vm339 = vcmask 1043456
        %v340 = vsel %vm339, %v335, 0.0
        %v341 = vsel %vm339, %v337, 0.0
        %v342 = vadd.f32 %v340, %v341
        %343 = vadd.xlane.f32.xlu0 %v342
        %v344 = vpop.xlane.xlu0 %343
        %v345 = vmul.f32 %v344, 0.00390625
        %v346 = vld [vmem:[%s2] sm:$0xf]
        %v347 = vmul.f32 %v345, %v346
        %vm348 = vcmask 27648
        %v349 = vsel %vm348, %v347, 0.0
        %v350 = vrot.slane %v349, 4
        %v351 = vadd.f32 %v349, %v350
        %v352 = vrot.slane %v351, 2
        %v353 = vadd.f32 %v351, %v352
        %v354 = vrot.slane %v353, 1
        %v355 = vadd.f32 %v353, %v354
        %v356 = vld [vmem:[%s3] sm:$0x1]
        %v357 = vadd.f32 %v355, %v356
        %v358 = vld [vmem:[%s4] sm:$0x1]
        %v359 = vsub.f32 %v357, %v358
        %v360 = vld [vmem:[%s5] sm:$0x1]
        %v361 = vmul.f32 %v359, %v360
        %v362 = vld [vmem:[%s6] sm:$0x1]
        %v363 = vadd.f32 %v361, %v362
        %v364 = vmax.f32 %v363, 0.0
        %vm365 = vcmask 24576
        %v366 = vsel %vm365, %v364, -inf
        %367 = vmax.xlane.f32.xlu0 %v366
        %v368 = vpop.xlane.xlu0 %367
        %v369 = vsub.f32 %v364, %v368
        %v370 = vmul.f32 %v369, 1.442695
        %v371 = vpow.pop %v370
        %v372 = vsel %vm365, %v371, 0.0
        %373 = vadd.xlane.f32.xlu0 %v372
        %v374 = vpop.xlane.xlu0 %373
        %v375 = vrcp.pop %v374
        %v376 = vmul.f32 %v371, %v375
        %v377 = vlaneseq
        %v378 = vshrl.u32 %v377, 7
        %v379 = vlaneseq
        %v380 = vand.u32 %v379, 127
        %vm381 = vcmp.eq.s32.totalorder %v378, %v380
        %v382 = vlaneseq
        %v383 = vshrl.u32 %v382, 7
        %v384 = vsub.s32 0, %v383
        %v385 = vrot.slane %v376, %v384
        %v386 = vsel %vm381, %v385, 0.0
        %v387 = vsel %vm348, %v386, 0.0
        %388 = vadd.xlane.f32.xlu0 %v387
        %v389 = vpop.xlane.xlu0 %388
        %v392 = vunpack.c.l.s4 839922192
        %v393 = vunpack.c.0.s8 %v392
        %v394 = vlaneseq
        %v395 = vshrl.u32 %v394, 7
        %v396 = vsub.s32 %v393, %v395
        %v397 = vrot.slane %v389, %v396
        %v399 = vmul.f32 %v335, %v397
        %400 = vst [vmem:[%s332] sm:$0xff] %v399
        %s401 = sand.u32 %s192, 1
        %s402 = scalar_lea.sflag [#allocation4], %s401
        %s403 = sand.u32 %s192, 1
        %s404 = smul.addr %s403, 8
        %s405 = scalar_lea.vmem [#allocation7], %s404
        // Predicated region
        $region57: #{tpu_custom_call.1} parent=47 // pred_check
          %p406 = pneg %p202
        $region58: #{tpu_custom_call.1} parent=47 // pred_check_branch
          %408 = sbr.rel (%p406) target = $region60
        $region59: #{tpu_custom_call.1} parent=47 // pred_region
          %s410 = ssub.s32 128, 128
          %411 = vsyncadd %s402, %s410
          %s412 = smul.addr %s27, 2
          %s413 = smul.addr %s412, 64
          %s414 = scalar_lea.hbm %s7, %s413
          %s416 = sshll.u32 %s405, 4
          %s417 = int_to_ptr.vmem [resolvable:$true] %s416
          %419 = dma.vmem_to_hbm [thread:$0]  %s417, 128, %s414, %s402
        $region60: #{tpu_custom_call.1} parent=47 // pred_fallthru
          _
      $region48: #{tpu_custom_call.1} parent=5 // pred_fallthru
        _
      %p420 = scmp.le.s32.totalorder 2, %s22
      // Predicated region
      $region61: #{tpu_custom_call.1} parent=5 // pred_check
        %p421 = pneg %p420
      $region62: #{tpu_custom_call.1} parent=5 // pred_check_branch
        %423 = sbr.rel (%p421) target = $region64
      $region63: #{tpu_custom_call.1} parent=5 // pred_region
        %s424 = ssub.s32 %s22, 2
        // Predicated region
        $region65: #{tpu_custom_call.1} parent=63 // pred_check
          %p425 = pneg %p208
        $region66: #{tpu_custom_call.1} parent=63 // pred_check_branch
          %427 = sbr.rel (%p425) target = $region68
        $region67: #{tpu_custom_call.1} parent=63 // pred_region
          %s428 = sand.u32 %s193, 1
          %s429 = scalar_lea.sflag [#allocation4], %s428
          %s430 = sand.u32 %s193, 1
          %s431 = smul.addr %s430, 8
          %s432 = scalar_lea.vmem [#allocation7], %s431
          %433 = dma.done %s429, 128
        $region68: #{tpu_custom_call.1} parent=63 // pred_fallthru
          _
      $region64: #{tpu_custom_call.1} parent=5 // pred_fallthru
        _
    $region6: #{tpu_custom_call.1} parent=1 // loop_footer
      %s26 = sadd.s32 1, %s22
    $region7: #{tpu_custom_call.1} parent=1 // loop_footer_branch
      %21 = sbr.rel target = $region3
    $region8: #{tpu_custom_call.1} parent=1 // loop_exit
      _
    %434 = vsyncpa [#allocation3], 1
    %s435 = scalar_lea.sflag [#allocation3], 1
    %436 = vsyncpa %s435, 1
    %437 = vsyncpa [#allocation6], 1
    %s438 = scalar_lea.sflag [#allocation6], 1
    %439 = vsyncpa %s438, 1
    %440 = vsyncpa [#allocation4], 1
    %s441 = scalar_lea.sflag [#allocation4], 1
    %442 = vsyncpa %s441, 1

</llo_original>
